<compile_context>
chip_gen: v5e
topology: v5e:2x2
jax: 0.10.0
libtpu: 0.0.40
codegen_flags: <defaults>
</compile_context>

<pallas_src>
import jax
import jax.numpy as jnp
from jax import lax
from jax.experimental import pallas as pl
from jax.experimental.pallas import tpu as pltpu

IN_FEATURES = 2
HIDDEN = 20

_LANES = 512          # slab lane width (4 f32 vregs wide)
_SUBR = 8             # rows per in-kernel compute chunk (one sublane group)
_MAX_TILE_ROWS = 512  # 512 rows x 512 lanes x 4 B = 1 MiB per block per buffer
                      # -> ~6 MiB total double-buffered (in x0,x1 + out)


def _round_up(v, m):
    return ((v + m - 1) // m) * m


def mlp_kernel(w1_ref, b1_ref, w2_ref, b2_ref, x0_ref, x1_ref, o_ref):
    """One (tile_rows, 512) batch slab of relu(x @ W1 + b1) @ W2 + b2.

    w1_ref: (2, 20) SMEM   b1_ref: (20,) SMEM   w2_ref: (20,) SMEM
    b2_ref: (1,)    SMEM
    x0_ref/x1_ref/o_ref: (tile_rows, 512) VMEM feature-plane / output slabs.

    The hidden loop is statically unrolled; each hidden unit is
    y += w2[j] * relu(w1[0,j]*x0 + w1[1,j]*x1 + b1[j]) computed with
    scalar-from-SMEM x vreg VPU ops.  Processed in 8-row chunks so the whole
    chain stays in vregs.
    """
    n_chunks = x0_ref.shape[0] // _SUBR
    b2 = b2_ref[0]

    def chunk(r, carry):
        rs = pl.ds(pl.multiple_of(r * _SUBR, _SUBR), _SUBR)
        x0 = x0_ref[rs, :]                               # (8, 512)
        x1 = x1_ref[rs, :]
        acc = jnp.zeros_like(x0)
        for j in range(HIDDEN):                          # statically unrolled
            h = w1_ref[0, j] * x0 + w1_ref[1, j] * x1 + b1_ref[j]
            acc = acc + w2_ref[j] * jnp.maximum(h, 0.0)
        o_ref[rs, :] = acc + b2                          # lane-dense store
        return carry

    lax.fori_loop(0, n_chunks, chunk, 0)


def _forward(x, w1, b1, w2, b2):
    """x: (B, 2) f32; w1: (2, 20); b1: (1, 20); w2: (20, 1); b2: (1, 1).
    Returns relu(x @ w1 + b1) @ w2 + b2 with shape (B, 1)."""
    B = x.shape[0]
    x = x.astype(jnp.float32)

    # ---- dense batch slab layout ----------------------------------------
    slab = _SUBR * _LANES                       # 4096 elements per 8-row slab
    Bp = _round_up(max(B, 1), slab)
    R = Bp // _LANES                            # total rows (multiple of 8)
    if R <= 2 * _SUBR:
        tile_rows = R                           # tiny batch: single block
    else:
        # >= 2 grid steps when possible (v7x megacore), capped so the
        # double-buffered working set stays well under v5e's 16 MiB scoped VMEM.
        tile_rows = min(_MAX_TILE_ROWS, _round_up(pl.cdiv(R, 2), _SUBR))
    n_tiles = pl.cdiv(R, tile_rows)

    # Feature planes as dense slabs: one fused slice+pad pass over x, no
    # full transposed copy.
    pad = Bp - B
    x0 = jnp.pad(x[:, 0], (0, pad)).reshape(R, _LANES)
    x1 = jnp.pad(x[:, 1], (0, pad)).reshape(R, _LANES)

    # Parameters as SMEM scalars (81 values total).
    w1s = w1.reshape(IN_FEATURES, HIDDEN).astype(jnp.float32)
    b1s = b1.reshape(HIDDEN).astype(jnp.float32)
    w2s = w2.reshape(HIDDEN).astype(jnp.float32)
    b2s = b2.reshape(1).astype(jnp.float32)

    smem = pl.BlockSpec(memory_space=pltpu.MemorySpace.SMEM)
    slab_spec = pl.BlockSpec((tile_rows, _LANES), lambda i: (i, 0))

    total = n_tiles * tile_rows * _LANES
    cost = pl.CostEstimate(
        flops=7 * HIDDEN * total,
        transcendentals=0,
        bytes_accessed=12 * total + 4 * (2 * HIDDEN + HIDDEN + HIDDEN + 1),
    )

    yt = pl.pallas_call(
        mlp_kernel,
        out_shape=jax.ShapeDtypeStruct((R, _LANES), jnp.float32),
        grid=(n_tiles,),
        in_specs=[smem, smem, smem, smem, slab_spec, slab_spec],
        out_specs=slab_spec,
        compiler_params=pltpu.CompilerParams(
            dimension_semantics=("parallel",),
        ),
        cost_estimate=cost,
    )(w1s, b1s, w2s, b2s, x0, x1)

    return yt.reshape(Bp)[:B].reshape(B, 1)


neural_network_forward = jax.jit(_forward)


def init_params(key):
    """Deterministic init mimicking PyTorch's default Linear init
    (uniform(-1/sqrt(fan_in), 1/sqrt(fan_in)))."""
    k1, k2, k3, k4 = jax.random.split(key, 4)
    bound1 = 1.0 / jnp.sqrt(2.0)   # fan_in = 2
    bound2 = 1.0 / jnp.sqrt(20.0)  # fan_in = 20
    w1 = jax.random.uniform(k1, (2, 20), jnp.float32, -bound1, bound1)
    b1 = jax.random.uniform(k2, (1, 20), jnp.float32, -bound1, bound1)
    w2 = jax.random.uniform(k3, (20, 1), jnp.float32, -bound2, bound2)
    b2 = jax.random.uniform(k4, (1, 1), jnp.float32, -bound2, bound2)
    return w1, b1, w2, b2


if __name__ == "__main__":
    key = jax.random.PRNGKey(0)
    k_params, k_x1, k_x2 = jax.random.split(key, 3)
    w1, b1, w2, b2 = init_params(k_params)

    def ref(x):
        return jnp.maximum(x @ w1 + b1, 0.0) @ w2 + b2

    # Small demo batch (single block path).
    B = 8
    x = jax.random.normal(k_x1, (B, 2), jnp.float32)
    y = jax.block_until_ready(neural_network_forward(x, w1, b1, w2, b2))
    assert y.shape == (B, 1)
    assert jnp.allclose(y, ref(x), atol=1e-5, rtol=1e-5)

    # Multi-tile / partial-last-block path (still tiny: 10k x 2 floats).
    B2 = 10000
    x2 = jax.random.normal(k_x2, (B2, 2), jnp.float32)
    y2 = jax.block_until_ready(neural_network_forward(x2, w1, b1, w2, b2))
    assert y2.shape == (B2, 1)
    assert jnp.allclose(y2, ref(x2), atol=1e-5, rtol=1e-5)

    print("KERNEL_OK")
</pallas_src>

<mosaic_0001>
module attributes {stable_mosaic.version = 11 : i64} {
  func.func @mlp_kernel(%arg0: i32, %arg1: memref<2x20xf32, #tpu.memory_space<smem>>, %arg2: memref<20xf32, #tpu.memory_space<smem>>, %arg3: memref<20xf32, #tpu.memory_space<smem>>, %arg4: memref<1xf32, #tpu.memory_space<smem>>, %arg5: memref<8x512xf32, #tpu.memory_space<vmem>>, %arg6: memref<8x512xf32, #tpu.memory_space<vmem>>, %arg7: memref<8x512xf32, #tpu.memory_space<vmem>>) attributes {dimension_semantics = [#tpu.dimension_semantics<parallel>], iteration_bounds = array<i64: 1>, scalar_prefetch = 0 : i64, scratch_operands = 0 : i64, tpu.core_type = #tpu.core_type<tc>, window_params = [{transform_indices = @transform_0, window_bounds = array<i64: 2, 20>}, {transform_indices = @transform_1, window_bounds = array<i64: 20>}, {transform_indices = @transform_2, window_bounds = array<i64: 20>}, {transform_indices = @transform_3, window_bounds = array<i64: 1>}, {transform_indices = @transform_4, window_bounds = array<i64: 8, 512>}, {transform_indices = @transform_5, window_bounds = array<i64: 8, 512>}, {transform_indices = @transform_6, window_bounds = array<i64: 8, 512>}]} {
    %c0 = arith.constant 0 : index
    %0 = memref.load %arg4[%c0] : memref<1xf32, #tpu.memory_space<smem>>
    %c0_i32 = arith.constant 0 : i32
    %c8_i32 = arith.constant 8 : i32
    %1 = arith.muli %c0_i32, %c8_i32 : i32
    %2 = tpu.assume_multiple %1, 8 : i32
    %3 = arith.index_cast %2 : i32 to index
    %c0_0 = arith.constant 0 : index
    %4 = vector.load %arg5[%3, %c0_0] : memref<8x512xf32, #tpu.memory_space<vmem>>, vector<8x512xf32>
    %5 = arith.index_cast %2 : i32 to index
    %c0_1 = arith.constant 0 : index
    %6 = vector.load %arg6[%5, %c0_1] : memref<8x512xf32, #tpu.memory_space<vmem>>, vector<8x512xf32>
    %cst = arith.constant 0.000000e+00 : f32
    %7 = vector.broadcast %cst : f32 to vector<8x512xf32>
    %c0_2 = arith.constant 0 : index
    %c0_3 = arith.constant 0 : index
    %8 = memref.load %arg1[%c0_2, %c0_3] : memref<2x20xf32, #tpu.memory_space<smem>>
    %9 = vector.broadcast %8 : f32 to vector<8x512xf32>
    %10 = arith.mulf %9, %4 : vector<8x512xf32>
    %c1 = arith.constant 1 : index
    %c0_4 = arith.constant 0 : index
    %11 = memref.load %arg1[%c1, %c0_4] : memref<2x20xf32, #tpu.memory_space<smem>>
    %12 = vector.broadcast %11 : f32 to vector<8x512xf32>
    %13 = arith.mulf %12, %6 : vector<8x512xf32>
    %14 = arith.addf %10, %13 : vector<8x512xf32>
    %c0_5 = arith.constant 0 : index
    %15 = memref.load %arg2[%c0_5] : memref<20xf32, #tpu.memory_space<smem>>
    %16 = vector.broadcast %15 : f32 to vector<8x512xf32>
    %17 = arith.addf %14, %16 : vector<8x512xf32>
    %c0_6 = arith.constant 0 : index
    %18 = memref.load %arg3[%c0_6] : memref<20xf32, #tpu.memory_space<smem>>
    %cst_7 = arith.constant 0.000000e+00 : f32
    %19 = vector.broadcast %cst_7 : f32 to vector<8x512xf32>
    %20 = arith.maximumf %17, %19 : vector<8x512xf32>
    %21 = vector.broadcast %18 : f32 to vector<8x512xf32>
    %22 = arith.mulf %21, %20 : vector<8x512xf32>
    %23 = arith.addf %7, %22 : vector<8x512xf32>
    %c0_8 = arith.constant 0 : index
    %c1_9 = arith.constant 1 : index
    %24 = memref.load %arg1[%c0_8, %c1_9] : memref<2x20xf32, #tpu.memory_space<smem>>
    %25 = vector.broadcast %24 : f32 to vector<8x512xf32>
    %26 = arith.mulf %25, %4 : vector<8x512xf32>
    %c1_10 = arith.constant 1 : index
    %c1_11 = arith.constant 1 : index
    %27 = memref.load %arg1[%c1_10, %c1_11] : memref<2x20xf32, #tpu.memory_space<smem>>
    %28 = vector.broadcast %27 : f32 to vector<8x512xf32>
    %29 = arith.mulf %28, %6 : vector<8x512xf32>
    %30 = arith.addf %26, %29 : vector<8x512xf32>
    %c1_12 = arith.constant 1 : index
    %31 = memref.load %arg2[%c1_12] : memref<20xf32, #tpu.memory_space<smem>>
    %32 = vector.broadcast %31 : f32 to vector<8x512xf32>
    %33 = arith.addf %30, %32 : vector<8x512xf32>
    %c1_13 = arith.constant 1 : index
    %34 = memref.load %arg3[%c1_13] : memref<20xf32, #tpu.memory_space<smem>>
    %cst_14 = arith.constant 0.000000e+00 : f32
    %35 = vector.broadcast %cst_14 : f32 to vector<8x512xf32>
    %36 = arith.maximumf %33, %35 : vector<8x512xf32>
    %37 = vector.broadcast %34 : f32 to vector<8x512xf32>
    %38 = arith.mulf %37, %36 : vector<8x512xf32>
    %39 = arith.addf %23, %38 : vector<8x512xf32>
    %c0_15 = arith.constant 0 : index
    %c2 = arith.constant 2 : index
    %40 = memref.load %arg1[%c0_15, %c2] : memref<2x20xf32, #tpu.memory_space<smem>>
    %41 = vector.broadcast %40 : f32 to vector<8x512xf32>
    %42 = arith.mulf %41, %4 : vector<8x512xf32>
    %c1_16 = arith.constant 1 : index
    %c2_17 = arith.constant 2 : index
    %43 = memref.load %arg1[%c1_16, %c2_17] : memref<2x20xf32, #tpu.memory_space<smem>>
    %44 = vector.broadcast %43 : f32 to vector<8x512xf32>
    %45 = arith.mulf %44, %6 : vector<8x512xf32>
    %46 = arith.addf %42, %45 : vector<8x512xf32>
    %c2_18 = arith.constant 2 : index
    %47 = memref.load %arg2[%c2_18] : memref<20xf32, #tpu.memory_space<smem>>
    %48 = vector.broadcast %47 : f32 to vector<8x512xf32>
    %49 = arith.addf %46, %48 : vector<8x512xf32>
    %c2_19 = arith.constant 2 : index
    %50 = memref.load %arg3[%c2_19] : memref<20xf32, #tpu.memory_space<smem>>
    %cst_20 = arith.constant 0.000000e+00 : f32
    %51 = vector.broadcast %cst_20 : f32 to vector<8x512xf32>
    %52 = arith.maximumf %49, %51 : vector<8x512xf32>
    %53 = vector.broadcast %50 : f32 to vector<8x512xf32>
    %54 = arith.mulf %53, %52 : vector<8x512xf32>
    %55 = arith.addf %39, %54 : vector<8x512xf32>
    %c0_21 = arith.constant 0 : index
    %c3 = arith.constant 3 : index
    %56 = memref.load %arg1[%c0_21, %c3] : memref<2x20xf32, #tpu.memory_space<smem>>
    %57 = vector.broadcast %56 : f32 to vector<8x512xf32>
    %58 = arith.mulf %57, %4 : vector<8x512xf32>
    %c1_22 = arith.constant 1 : index
    %c3_23 = arith.constant 3 : index
    %59 = memref.load %arg1[%c1_22, %c3_23] : memref<2x20xf32, #tpu.memory_space<smem>>
    %60 = vector.broadcast %59 : f32 to vector<8x512xf32>
    %61 = arith.mulf %60, %6 : vector<8x512xf32>
    %62 = arith.addf %58, %61 : vector<8x512xf32>
    %c3_24 = arith.constant 3 : index
    %63 = memref.load %arg2[%c3_24] : memref<20xf32, #tpu.memory_space<smem>>
    %64 = vector.broadcast %63 : f32 to vector<8x512xf32>
    %65 = arith.addf %62, %64 : vector<8x512xf32>
    %c3_25 = arith.constant 3 : index
    %66 = memref.load %arg3[%c3_25] : memref<20xf32, #tpu.memory_space<smem>>
    %cst_26 = arith.constant 0.000000e+00 : f32
    %67 = vector.broadcast %cst_26 : f32 to vector<8x512xf32>
    %68 = arith.maximumf %65, %67 : vector<8x512xf32>
    %69 = vector.broadcast %66 : f32 to vector<8x512xf32>
    %70 = arith.mulf %69, %68 : vector<8x512xf32>
    %71 = arith.addf %55, %70 : vector<8x512xf32>
    %c0_27 = arith.constant 0 : index
    %c4 = arith.constant 4 : index
    %72 = memref.load %arg1[%c0_27, %c4] : memref<2x20xf32, #tpu.memory_space<smem>>
    %73 = vector.broadcast %72 : f32 to vector<8x512xf32>
    %74 = arith.mulf %73, %4 : vector<8x512xf32>
    %c1_28 = arith.constant 1 : index
    %c4_29 = arith.constant 4 : index
    %75 = memref.load %arg1[%c1_28, %c4_29] : memref<2x20xf32, #tpu.memory_space<smem>>
    %76 = vector.broadcast %75 : f32 to vector<8x512xf32>
    %77 = arith.mulf %76, %6 : vector<8x512xf32>
    %78 = arith.addf %74, %77 : vector<8x512xf32>
    %c4_30 = arith.constant 4 : index
    %79 = memref.load %arg2[%c4_30] : memref<20xf32, #tpu.memory_space<smem>>
    %80 = vector.broadcast %79 : f32 to vector<8x512xf32>
    %81 = arith.addf %78, %80 : vector<8x512xf32>
    %c4_31 = arith.constant 4 : index
    %82 = memref.load %arg3[%c4_31] : memref<20xf32, #tpu.memory_space<smem>>
    %cst_32 = arith.constant 0.000000e+00 : f32
    %83 = vector.broadcast %cst_32 : f32 to vector<8x512xf32>
    %84 = arith.maximumf %81, %83 : vector<8x512xf32>
    %85 = vector.broadcast %82 : f32 to vector<8x512xf32>
    %86 = arith.mulf %85, %84 : vector<8x512xf32>
    %87 = arith.addf %71, %86 : vector<8x512xf32>
    %c0_33 = arith.constant 0 : index
    %c5 = arith.constant 5 : index
    %88 = memref.load %arg1[%c0_33, %c5] : memref<2x20xf32, #tpu.memory_space<smem>>
    %89 = vector.broadcast %88 : f32 to vector<8x512xf32>
    %90 = arith.mulf %89, %4 : vector<8x512xf32>
    %c1_34 = arith.constant 1 : index
    %c5_35 = arith.constant 5 : index
    %91 = memref.load %arg1[%c1_34, %c5_35] : memref<2x20xf32, #tpu.memory_space<smem>>
    %92 = vector.broadcast %91 : f32 to vector<8x512xf32>
    %93 = arith.mulf %92, %6 : vector<8x512xf32>
    %94 = arith.addf %90, %93 : vector<8x512xf32>
    %c5_36 = arith.constant 5 : index
    %95 = memref.load %arg2[%c5_36] : memref<20xf32, #tpu.memory_space<smem>>
    %96 = vector.broadcast %95 : f32 to vector<8x512xf32>
    %97 = arith.addf %94, %96 : vector<8x512xf32>
    %c5_37 = arith.constant 5 : index
    %98 = memref.load %arg3[%c5_37] : memref<20xf32, #tpu.memory_space<smem>>
    %cst_38 = arith.constant 0.000000e+00 : f32
    %99 = vector.broadcast %cst_38 : f32 to vector<8x512xf32>
    %100 = arith.maximumf %97, %99 : vector<8x512xf32>
    %101 = vector.broadcast %98 : f32 to vector<8x512xf32>
    %102 = arith.mulf %101, %100 : vector<8x512xf32>
    %103 = arith.addf %87, %102 : vector<8x512xf32>
    %c0_39 = arith.constant 0 : index
    %c6 = arith.constant 6 : index
    %104 = memref.load %arg1[%c0_39, %c6] : memref<2x20xf32, #tpu.memory_space<smem>>
    %105 = vector.broadcast %104 : f32 to vector<8x512xf32>
    %106 = arith.mulf %105, %4 : vector<8x512xf32>
    %c1_40 = arith.constant 1 : index
    %c6_41 = arith.constant 6 : index
    %107 = memref.load %arg1[%c1_40, %c6_41] : memref<2x20xf32, #tpu.memory_space<smem>>
    %108 = vector.broadcast %107 : f32 to vector<8x512xf32>
    %109 = arith.mulf %108, %6 : vector<8x512xf32>
    %110 = arith.addf %106, %109 : vector<8x512xf32>
    %c6_42 = arith.constant 6 : index
    %111 = memref.load %arg2[%c6_42] : memref<20xf32, #tpu.memory_space<smem>>
    %112 = vector.broadcast %111 : f32 to vector<8x512xf32>
    %113 = arith.addf %110, %112 : vector<8x512xf32>
    %c6_43 = arith.constant 6 : index
    %114 = memref.load %arg3[%c6_43] : memref<20xf32, #tpu.memory_space<smem>>
    %cst_44 = arith.constant 0.000000e+00 : f32
    %115 = vector.broadcast %cst_44 : f32 to vector<8x512xf32>
    %116 = arith.maximumf %113, %115 : vector<8x512xf32>
    %117 = vector.broadcast %114 : f32 to vector<8x512xf32>
    %118 = arith.mulf %117, %116 : vector<8x512xf32>
    %119 = arith.addf %103, %118 : vector<8x512xf32>
    %c0_45 = arith.constant 0 : index
    %c7 = arith.constant 7 : index
    %120 = memref.load %arg1[%c0_45, %c7] : memref<2x20xf32, #tpu.memory_space<smem>>
    %121 = vector.broadcast %120 : f32 to vector<8x512xf32>
    %122 = arith.mulf %121, %4 : vector<8x512xf32>
    %c1_46 = arith.constant 1 : index
    %c7_47 = arith.constant 7 : index
    %123 = memref.load %arg1[%c1_46, %c7_47] : memref<2x20xf32, #tpu.memory_space<smem>>
    %124 = vector.broadcast %123 : f32 to vector<8x512xf32>
    %125 = arith.mulf %124, %6 : vector<8x512xf32>
    %126 = arith.addf %122, %125 : vector<8x512xf32>
    %c7_48 = arith.constant 7 : index
    %127 = memref.load %arg2[%c7_48] : memref<20xf32, #tpu.memory_space<smem>>
    %128 = vector.broadcast %127 : f32 to vector<8x512xf32>
    %129 = arith.addf %126, %128 : vector<8x512xf32>
    %c7_49 = arith.constant 7 : index
    %130 = memref.load %arg3[%c7_49] : memref<20xf32, #tpu.memory_space<smem>>
    %cst_50 = arith.constant 0.000000e+00 : f32
    %131 = vector.broadcast %cst_50 : f32 to vector<8x512xf32>
    %132 = arith.maximumf %129, %131 : vector<8x512xf32>
    %133 = vector.broadcast %130 : f32 to vector<8x512xf32>
    %134 = arith.mulf %133, %132 : vector<8x512xf32>
    %135 = arith.addf %119, %134 : vector<8x512xf32>
    %c0_51 = arith.constant 0 : index
    %c8 = arith.constant 8 : index
    %136 = memref.load %arg1[%c0_51, %c8] : memref<2x20xf32, #tpu.memory_space<smem>>
    %137 = vector.broadcast %136 : f32 to vector<8x512xf32>
    %138 = arith.mulf %137, %4 : vector<8x512xf32>
    %c1_52 = arith.constant 1 : index
    %c8_53 = arith.constant 8 : index
    %139 = memref.load %arg1[%c1_52, %c8_53] : memref<2x20xf32, #tpu.memory_space<smem>>
    %140 = vector.broadcast %139 : f32 to vector<8x512xf32>
    %141 = arith.mulf %140, %6 : vector<8x512xf32>
    %142 = arith.addf %138, %141 : vector<8x512xf32>
    %c8_54 = arith.constant 8 : index
    %143 = memref.load %arg2[%c8_54] : memref<20xf32, #tpu.memory_space<smem>>
    %144 = vector.broadcast %143 : f32 to vector<8x512xf32>
    %145 = arith.addf %142, %144 : vector<8x512xf32>
    %c8_55 = arith.constant 8 : index
    %146 = memref.load %arg3[%c8_55] : memref<20xf32, #tpu.memory_space<smem>>
    %cst_56 = arith.constant 0.000000e+00 : f32
    %147 = vector.broadcast %cst_56 : f32 to vector<8x512xf32>
    %148 = arith.maximumf %145, %147 : vector<8x512xf32>
    %149 = vector.broadcast %146 : f32 to vector<8x512xf32>
    %150 = arith.mulf %149, %148 : vector<8x512xf32>
    %151 = arith.addf %135, %150 : vector<8x512xf32>
    %c0_57 = arith.constant 0 : index
    %c9 = arith.constant 9 : index
    %152 = memref.load %arg1[%c0_57, %c9] : memref<2x20xf32, #tpu.memory_space<smem>>
    %153 = vector.broadcast %152 : f32 to vector<8x512xf32>
    %154 = arith.mulf %153, %4 : vector<8x512xf32>
    %c1_58 = arith.constant 1 : index
    %c9_59 = arith.constant 9 : index
    %155 = memref.load %arg1[%c1_58, %c9_59] : memref<2x20xf32, #tpu.memory_space<smem>>
    %156 = vector.broadcast %155 : f32 to vector<8x512xf32>
    %157 = arith.mulf %156, %6 : vector<8x512xf32>
    %158 = arith.addf %154, %157 : vector<8x512xf32>
    %c9_60 = arith.constant 9 : index
    %159 = memref.load %arg2[%c9_60] : memref<20xf32, #tpu.memory_space<smem>>
    %160 = vector.broadcast %159 : f32 to vector<8x512xf32>
    %161 = arith.addf %158, %160 : vector<8x512xf32>
    %c9_61 = arith.constant 9 : index
    %162 = memref.load %arg3[%c9_61] : memref<20xf32, #tpu.memory_space<smem>>
    %cst_62 = arith.constant 0.000000e+00 : f32
    %163 = vector.broadcast %cst_62 : f32 to vector<8x512xf32>
    %164 = arith.maximumf %161, %163 : vector<8x512xf32>
    %165 = vector.broadcast %162 : f32 to vector<8x512xf32>
    %166 = arith.mulf %165, %164 : vector<8x512xf32>
    %167 = arith.addf %151, %166 : vector<8x512xf32>
    %c0_63 = arith.constant 0 : index
    %c10 = arith.constant 10 : index
    %168 = memref.load %arg1[%c0_63, %c10] : memref<2x20xf32, #tpu.memory_space<smem>>
    %169 = vector.broadcast %168 : f32 to vector<8x512xf32>
    %170 = arith.mulf %169, %4 : vector<8x512xf32>
    %c1_64 = arith.constant 1 : index
    %c10_65 = arith.constant 10 : index
    %171 = memref.load %arg1[%c1_64, %c10_65] : memref<2x20xf32, #tpu.memory_space<smem>>
    %172 = vector.broadcast %171 : f32 to vector<8x512xf32>
    %173 = arith.mulf %172, %6 : vector<8x512xf32>
    %174 = arith.addf %170, %173 : vector<8x512xf32>
    %c10_66 = arith.constant 10 : index
    %175 = memref.load %arg2[%c10_66] : memref<20xf32, #tpu.memory_space<smem>>
    %176 = vector.broadcast %175 : f32 to vector<8x512xf32>
    %177 = arith.addf %174, %176 : vector<8x512xf32>
    %c10_67 = arith.constant 10 : index
    %178 = memref.load %arg3[%c10_67] : memref<20xf32, #tpu.memory_space<smem>>
    %cst_68 = arith.constant 0.000000e+00 : f32
    %179 = vector.broadcast %cst_68 : f32 to vector<8x512xf32>
    %180 = arith.maximumf %177, %179 : vector<8x512xf32>
    %181 = vector.broadcast %178 : f32 to vector<8x512xf32>
    %182 = arith.mulf %181, %180 : vector<8x512xf32>
    %183 = arith.addf %167, %182 : vector<8x512xf32>
    %c0_69 = arith.constant 0 : index
    %c11 = arith.constant 11 : index
    %184 = memref.load %arg1[%c0_69, %c11] : memref<2x20xf32, #tpu.memory_space<smem>>
    %185 = vector.broadcast %184 : f32 to vector<8x512xf32>
    %186 = arith.mulf %185, %4 : vector<8x512xf32>
    %c1_70 = arith.constant 1 : index
    %c11_71 = arith.constant 11 : index
    %187 = memref.load %arg1[%c1_70, %c11_71] : memref<2x20xf32, #tpu.memory_space<smem>>
    %188 = vector.broadcast %187 : f32 to vector<8x512xf32>
    %189 = arith.mulf %188, %6 : vector<8x512xf32>
    %190 = arith.addf %186, %189 : vector<8x512xf32>
    %c11_72 = arith.constant 11 : index
    %191 = memref.load %arg2[%c11_72] : memref<20xf32, #tpu.memory_space<smem>>
    %192 = vector.broadcast %191 : f32 to vector<8x512xf32>
    %193 = arith.addf %190, %192 : vector<8x512xf32>
    %c11_73 = arith.constant 11 : index
    %194 = memref.load %arg3[%c11_73] : memref<20xf32, #tpu.memory_space<smem>>
    %cst_74 = arith.constant 0.000000e+00 : f32
    %195 = vector.broadcast %cst_74 : f32 to vector<8x512xf32>
    %196 = arith.maximumf %193, %195 : vector<8x512xf32>
    %197 = vector.broadcast %194 : f32 to vector<8x512xf32>
    %198 = arith.mulf %197, %196 : vector<8x512xf32>
    %199 = arith.addf %183, %198 : vector<8x512xf32>
    %c0_75 = arith.constant 0 : index
    %c12 = arith.constant 12 : index
    %200 = memref.load %arg1[%c0_75, %c12] : memref<2x20xf32, #tpu.memory_space<smem>>
    %201 = vector.broadcast %200 : f32 to vector<8x512xf32>
    %202 = arith.mulf %201, %4 : vector<8x512xf32>
    %c1_76 = arith.constant 1 : index
    %c12_77 = arith.constant 12 : index
    %203 = memref.load %arg1[%c1_76, %c12_77] : memref<2x20xf32, #tpu.memory_space<smem>>
    %204 = vector.broadcast %203 : f32 to vector<8x512xf32>
    %205 = arith.mulf %204, %6 : vector<8x512xf32>
    %206 = arith.addf %202, %205 : vector<8x512xf32>
    %c12_78 = arith.constant 12 : index
    %207 = memref.load %arg2[%c12_78] : memref<20xf32, #tpu.memory_space<smem>>
    %208 = vector.broadcast %207 : f32 to vector<8x512xf32>
    %209 = arith.addf %206, %208 : vector<8x512xf32>
    %c12_79 = arith.constant 12 : index
    %210 = memref.load %arg3[%c12_79] : memref<20xf32, #tpu.memory_space<smem>>
    %cst_80 = arith.constant 0.000000e+00 : f32
    %211 = vector.broadcast %cst_80 : f32 to vector<8x512xf32>
    %212 = arith.maximumf %209, %211 : vector<8x512xf32>
    %213 = vector.broadcast %210 : f32 to vector<8x512xf32>
    %214 = arith.mulf %213, %212 : vector<8x512xf32>
    %215 = arith.addf %199, %214 : vector<8x512xf32>
    %c0_81 = arith.constant 0 : index
    %c13 = arith.constant 13 : index
    %216 = memref.load %arg1[%c0_81, %c13] : memref<2x20xf32, #tpu.memory_space<smem>>
    %217 = vector.broadcast %216 : f32 to vector<8x512xf32>
    %218 = arith.mulf %217, %4 : vector<8x512xf32>
    %c1_82 = arith.constant 1 : index
    %c13_83 = arith.constant 13 : index
    %219 = memref.load %arg1[%c1_82, %c13_83] : memref<2x20xf32, #tpu.memory_space<smem>>
    %220 = vector.broadcast %219 : f32 to vector<8x512xf32>
    %221 = arith.mulf %220, %6 : vector<8x512xf32>
    %222 = arith.addf %218, %221 : vector<8x512xf32>
    %c13_84 = arith.constant 13 : index
    %223 = memref.load %arg2[%c13_84] : memref<20xf32, #tpu.memory_space<smem>>
    %224 = vector.broadcast %223 : f32 to vector<8x512xf32>
    %225 = arith.addf %222, %224 : vector<8x512xf32>
    %c13_85 = arith.constant 13 : index
    %226 = memref.load %arg3[%c13_85] : memref<20xf32, #tpu.memory_space<smem>>
    %cst_86 = arith.constant 0.000000e+00 : f32
    %227 = vector.broadcast %cst_86 : f32 to vector<8x512xf32>
    %228 = arith.maximumf %225, %227 : vector<8x512xf32>
    %229 = vector.broadcast %226 : f32 to vector<8x512xf32>
    %230 = arith.mulf %229, %228 : vector<8x512xf32>
    %231 = arith.addf %215, %230 : vector<8x512xf32>
    %c0_87 = arith.constant 0 : index
    %c14 = arith.constant 14 : index
    %232 = memref.load %arg1[%c0_87, %c14] : memref<2x20xf32, #tpu.memory_space<smem>>
    %233 = vector.broadcast %232 : f32 to vector<8x512xf32>
    %234 = arith.mulf %233, %4 : vector<8x512xf32>
    %c1_88 = arith.constant 1 : index
    %c14_89 = arith.constant 14 : index
    %235 = memref.load %arg1[%c1_88, %c14_89] : memref<2x20xf32, #tpu.memory_space<smem>>
    %236 = vector.broadcast %235 : f32 to vector<8x512xf32>
    %237 = arith.mulf %236, %6 : vector<8x512xf32>
    %238 = arith.addf %234, %237 : vector<8x512xf32>
    %c14_90 = arith.constant 14 : index
    %239 = memref.load %arg2[%c14_90] : memref<20xf32, #tpu.memory_space<smem>>
    %240 = vector.broadcast %239 : f32 to vector<8x512xf32>
    %241 = arith.addf %238, %240 : vector<8x512xf32>
    %c14_91 = arith.constant 14 : index
    %242 = memref.load %arg3[%c14_91] : memref<20xf32, #tpu.memory_space<smem>>
    %cst_92 = arith.constant 0.000000e+00 : f32
    %243 = vector.broadcast %cst_92 : f32 to vector<8x512xf32>
    %244 = arith.maximumf %241, %243 : vector<8x512xf32>
    %245 = vector.broadcast %242 : f32 to vector<8x512xf32>
    %246 = arith.mulf %245, %244 : vector<8x512xf32>
    %247 = arith.addf %231, %246 : vector<8x512xf32>
    %c0_93 = arith.constant 0 : index
    %c15 = arith.constant 15 : index
    %248 = memref.load %arg1[%c0_93, %c15] : memref<2x20xf32, #tpu.memory_space<smem>>
    %249 = vector.broadcast %248 : f32 to vector<8x512xf32>
    %250 = arith.mulf %249, %4 : vector<8x512xf32>
    %c1_94 = arith.constant 1 : index
    %c15_95 = arith.constant 15 : index
    %251 = memref.load %arg1[%c1_94, %c15_95] : memref<2x20xf32, #tpu.memory_space<smem>>
    %252 = vector.broadcast %251 : f32 to vector<8x512xf32>
    %253 = arith.mulf %252, %6 : vector<8x512xf32>
    %254 = arith.addf %250, %253 : vector<8x512xf32>
    %c15_96 = arith.constant 15 : index
    %255 = memref.load %arg2[%c15_96] : memref<20xf32, #tpu.memory_space<smem>>
    %256 = vector.broadcast %255 : f32 to vector<8x512xf32>
    %257 = arith.addf %254, %256 : vector<8x512xf32>
    %c15_97 = arith.constant 15 : index
    %258 = memref.load %arg3[%c15_97] : memref<20xf32, #tpu.memory_space<smem>>
    %cst_98 = arith.constant 0.000000e+00 : f32
    %259 = vector.broadcast %cst_98 : f32 to vector<8x512xf32>
    %260 = arith.maximumf %257, %259 : vector<8x512xf32>
    %261 = vector.broadcast %258 : f32 to vector<8x512xf32>
    %262 = arith.mulf %261, %260 : vector<8x512xf32>
    %263 = arith.addf %247, %262 : vector<8x512xf32>
    %c0_99 = arith.constant 0 : index
    %c16 = arith.constant 16 : index
    %264 = memref.load %arg1[%c0_99, %c16] : memref<2x20xf32, #tpu.memory_space<smem>>
    %265 = vector.broadcast %264 : f32 to vector<8x512xf32>
    %266 = arith.mulf %265, %4 : vector<8x512xf32>
    %c1_100 = arith.constant 1 : index
    %c16_101 = arith.constant 16 : index
    %267 = memref.load %arg1[%c1_100, %c16_101] : memref<2x20xf32, #tpu.memory_space<smem>>
    %268 = vector.broadcast %267 : f32 to vector<8x512xf32>
    %269 = arith.mulf %268, %6 : vector<8x512xf32>
    %270 = arith.addf %266, %269 : vector<8x512xf32>
    %c16_102 = arith.constant 16 : index
    %271 = memref.load %arg2[%c16_102] : memref<20xf32, #tpu.memory_space<smem>>
    %272 = vector.broadcast %271 : f32 to vector<8x512xf32>
    %273 = arith.addf %270, %272 : vector<8x512xf32>
    %c16_103 = arith.constant 16 : index
    %274 = memref.load %arg3[%c16_103] : memref<20xf32, #tpu.memory_space<smem>>
    %cst_104 = arith.constant 0.000000e+00 : f32
    %275 = vector.broadcast %cst_104 : f32 to vector<8x512xf32>
    %276 = arith.maximumf %273, %275 : vector<8x512xf32>
    %277 = vector.broadcast %274 : f32 to vector<8x512xf32>
    %278 = arith.mulf %277, %276 : vector<8x512xf32>
    %279 = arith.addf %263, %278 : vector<8x512xf32>
    %c0_105 = arith.constant 0 : index
    %c17 = arith.constant 17 : index
    %280 = memref.load %arg1[%c0_105, %c17] : memref<2x20xf32, #tpu.memory_space<smem>>
    %281 = vector.broadcast %280 : f32 to vector<8x512xf32>
    %282 = arith.mulf %281, %4 : vector<8x512xf32>
    %c1_106 = arith.constant 1 : index
    %c17_107 = arith.constant 17 : index
    %283 = memref.load %arg1[%c1_106, %c17_107] : memref<2x20xf32, #tpu.memory_space<smem>>
    %284 = vector.broadcast %283 : f32 to vector<8x512xf32>
    %285 = arith.mulf %284, %6 : vector<8x512xf32>
    %286 = arith.addf %282, %285 : vector<8x512xf32>
    %c17_108 = arith.constant 17 : index
    %287 = memref.load %arg2[%c17_108] : memref<20xf32, #tpu.memory_space<smem>>
    %288 = vector.broadcast %287 : f32 to vector<8x512xf32>
    %289 = arith.addf %286, %288 : vector<8x512xf32>
    %c17_109 = arith.constant 17 : index
    %290 = memref.load %arg3[%c17_109] : memref<20xf32, #tpu.memory_space<smem>>
    %cst_110 = arith.constant 0.000000e+00 : f32
    %291 = vector.broadcast %cst_110 : f32 to vector<8x512xf32>
    %292 = arith.maximumf %289, %291 : vector<8x512xf32>
    %293 = vector.broadcast %290 : f32 to vector<8x512xf32>
    %294 = arith.mulf %293, %292 : vector<8x512xf32>
    %295 = arith.addf %279, %294 : vector<8x512xf32>
    %c0_111 = arith.constant 0 : index
    %c18 = arith.constant 18 : index
    %296 = memref.load %arg1[%c0_111, %c18] : memref<2x20xf32, #tpu.memory_space<smem>>
    %297 = vector.broadcast %296 : f32 to vector<8x512xf32>
    %298 = arith.mulf %297, %4 : vector<8x512xf32>
    %c1_112 = arith.constant 1 : index
    %c18_113 = arith.constant 18 : index
    %299 = memref.load %arg1[%c1_112, %c18_113] : memref<2x20xf32, #tpu.memory_space<smem>>
    %300 = vector.broadcast %299 : f32 to vector<8x512xf32>
    %301 = arith.mulf %300, %6 : vector<8x512xf32>
    %302 = arith.addf %298, %301 : vector<8x512xf32>
    %c18_114 = arith.constant 18 : index
    %303 = memref.load %arg2[%c18_114] : memref<20xf32, #tpu.memory_space<smem>>
    %304 = vector.broadcast %303 : f32 to vector<8x512xf32>
    %305 = arith.addf %302, %304 : vector<8x512xf32>
    %c18_115 = arith.constant 18 : index
    %306 = memref.load %arg3[%c18_115] : memref<20xf32, #tpu.memory_space<smem>>
    %cst_116 = arith.constant 0.000000e+00 : f32
    %307 = vector.broadcast %cst_116 : f32 to vector<8x512xf32>
    %308 = arith.maximumf %305, %307 : vector<8x512xf32>
    %309 = vector.broadcast %306 : f32 to vector<8x512xf32>
    %310 = arith.mulf %309, %308 : vector<8x512xf32>
    %311 = arith.addf %295, %310 : vector<8x512xf32>
    %c0_117 = arith.constant 0 : index
    %c19 = arith.constant 19 : index
    %312 = memref.load %arg1[%c0_117, %c19] : memref<2x20xf32, #tpu.memory_space<smem>>
    %313 = vector.broadcast %312 : f32 to vector<8x512xf32>
    %314 = arith.mulf %313, %4 : vector<8x512xf32>
    %c1_118 = arith.constant 1 : index
    %c19_119 = arith.constant 19 : index
    %315 = memref.load %arg1[%c1_118, %c19_119] : memref<2x20xf32, #tpu.memory_space<smem>>
    %316 = vector.broadcast %315 : f32 to vector<8x512xf32>
    %317 = arith.mulf %316, %6 : vector<8x512xf32>
    %318 = arith.addf %314, %317 : vector<8x512xf32>
    %c19_120 = arith.constant 19 : index
    %319 = memref.load %arg2[%c19_120] : memref<20xf32, #tpu.memory_space<smem>>
    %320 = vector.broadcast %319 : f32 to vector<8x512xf32>
    %321 = arith.addf %318, %320 : vector<8x512xf32>
    %c19_121 = arith.constant 19 : index
    %322 = memref.load %arg3[%c19_121] : memref<20xf32, #tpu.memory_space<smem>>
    %cst_122 = arith.constant 0.000000e+00 : f32
    %323 = vector.broadcast %cst_122 : f32 to vector<8x512xf32>
    %324 = arith.maximumf %321, %323 : vector<8x512xf32>
    %325 = vector.broadcast %322 : f32 to vector<8x512xf32>
    %326 = arith.mulf %325, %324 : vector<8x512xf32>
    %327 = arith.addf %311, %326 : vector<8x512xf32>
    %328 = vector.broadcast %0 : f32 to vector<8x512xf32>
    %329 = arith.addf %327, %328 : vector<8x512xf32>
    %330 = arith.index_cast %2 : i32 to index
    %c0_123 = arith.constant 0 : index
    %331 = vector.load %arg7[%330, %c0_123] : memref<8x512xf32, #tpu.memory_space<vmem>>, vector<8x512xf32>
    tpu.vector_store %arg7[%330, %c0_123], %329 {strides = array<i32>} : memref<8x512xf32, #tpu.memory_space<vmem>>, vector<8x512xf32>,
    %c1_i32 = arith.constant 1 : i32
    return
  }
  func.func @transform_0(%arg0: i32) -> (i32, i32) {
    %c0_i32 = arith.constant 0 : i32
    %c0_i32_0 = arith.constant 0 : i32
    %c0_i32_1 = arith.constant 0 : i32
    return %c0_i32, %c0_i32_0 : i32, i32
  }
  func.func @transform_1(%arg0: i32) -> i32 {
    %c0_i32 = arith.constant 0 : i32
    %c0_i32_0 = arith.constant 0 : i32
    return %c0_i32 : i32
  }
  func.func @transform_2(%arg0: i32) -> i32 {
    %c0_i32 = arith.constant 0 : i32
    %c0_i32_0 = arith.constant 0 : i32
    return %c0_i32 : i32
  }
  func.func @transform_3(%arg0: i32) -> i32 {
    %c0_i32 = arith.constant 0 : i32
    %c0_i32_0 = arith.constant 0 : i32
    return %c0_i32 : i32
  }
  func.func @transform_4(%arg0: i32) -> (i32, i32) {
    %c0_i32 = arith.constant 0 : i32
    %c0_i32_0 = arith.constant 0 : i32
    return %arg0, %c0_i32 : i32, i32
  }
  func.func @transform_5(%arg0: i32) -> (i32, i32) {
    %c0_i32 = arith.constant 0 : i32
    %c0_i32_0 = arith.constant 0 : i32
    return %arg0, %c0_i32 : i32, i32
  }
  func.func @transform_6(%arg0: i32) -> (i32, i32) {
    %c0_i32 = arith.constant 0 : i32
    %c0_i32_0 = arith.constant 0 : i32
    return %arg0, %c0_i32 : i32, i32
  }
}

</mosaic_0001>

<llo_original>
// kernel: _forward.1
$region0: #{_forward.1}
  #allocation0 [shape = 'u32[]', space=smem, size = 0x4, offset = 0x4, fixed_abs, tag = 'smem constant byte address 0x4 - core index']
  #allocation1 [shape = 'u32[72,128]{1,0:T(1,128)}', space=vmem, size = 0x9000, scoped, tag = 'internal scratch']
  #allocation2 [shape = 'f32[1]{0:T(128)S(6)}', space=smem, size = 0x200, scoped, tag = 'scoped memory for _forward.1']
  %s0 = inlined_call_operand.vmem [shape: f32[2,20], index: 0, kind: input, shape index: {}]
  %s1 = inlined_call_operand.vmem [shape: f32[20], index: 1, kind: input, shape index: {}]
  %s2 = inlined_call_operand.vmem [shape: f32[20], index: 2, kind: input, shape index: {}]
  %s3 = inlined_call_operand.<no memory space> [shape: f32[1], index: 3, kind: input, shape index: {}]
  %s4 = inlined_call_operand.vmem [shape: f32[8,512], index: 4, kind: input, shape index: {}]
  %s5 = inlined_call_operand.vmem [shape: f32[8,512], index: 5, kind: input, shape index: {}]
  %s6 = inlined_call_operand.vmem [shape: f32[8,512], index: 6, kind: output, shape index: {}]
  %s7 = sld [smem:[#allocation0]]
  $region46: #{_forward.1} parent=0
    _
  %s9 = ssub.s32 1, %s7
  %s10 = scalar_select 0, %s9, %s7
  %11 = sst [smem:[#allocation2]] %s3
  $region1: #{_forward.1} parent=0
    #allocation3 [shape = 'u8[1024]{0}', space=smem, size = 0x400, scoped, tag = 'input window, operand 0, single buffered']
    #allocation4 [shape = 's32[1]{0}', space=sflag, size = 0x4, scoped, tag = 'scoped memory for _forward.1']
    #allocation5 [shape = 'u8[512]{0}', space=smem, size = 0x200, scoped, tag = 'input window, operand 1, single buffered']
    #allocation6 [shape = 's32[1]{0}', space=sflag, size = 0x4, scoped, tag = 'scoped memory for _forward.1']
    #allocation7 [shape = 'u8[512]{0}', space=smem, size = 0x200, scoped, tag = 'input window, operand 2, single buffered']
    %12 = vsyncpa [#allocation4], 0
    %13 = vsyncpa [#allocation6], 0
    // Predicated region
    $region2: #{_forward.1} parent=1 // pred_check
      _
    $region3: #{_forward.1} parent=1 // pred_check_branch
      %15 = sbr.rel (0) target = $region5
    $region4: #{_forward.1} parent=1 // pred_region
      %17 = vsyncadd [#allocation4], 0
      %s19 = sshll.u32 %s0, 4
      %s20 = int_to_ptr.vmem [resolvable:$true] %s19
      %22 = dma.vmem_to_smem %s20, 32, [#allocation3], [#allocation4]
    $region5: #{_forward.1} parent=1 // pred_fallthru
      _
    // Predicated region
    $region6: #{_forward.1} parent=1 // pred_check
      _
    $region7: #{_forward.1} parent=1 // pred_check_branch
      %24 = sbr.rel (0) target = $region9
    $region8: #{_forward.1} parent=1 // pred_region
      %26 = vsyncadd [#allocation6], 0
      %s28 = sshll.u32 %s1, 4
      %s29 = int_to_ptr.vmem [resolvable:$true] %s28
      %31 = dma.vmem_to_smem %s29, 16, [#allocation5], [#allocation6]
    $region9: #{_forward.1} parent=1 // pred_fallthru
      _
    // Predicated region
    $region10: #{_forward.1} parent=1 // pred_check
      _
    $region11: #{_forward.1} parent=1 // pred_check_branch
      %33 = sbr.rel (0) target = $region13
    $region12: #{_forward.1} parent=1 // pred_region
      %35 = vsyncadd [#allocation6], 0
      %s37 = sshll.u32 %s2, 4
      %s38 = int_to_ptr.vmem [resolvable:$true] %s37
      %40 = dma.vmem_to_smem %s38, 16, [#allocation7], [#allocation6]
    $region13: #{_forward.1} parent=1 // pred_fallthru
      _
    // Predicated region
    $region14: #{_forward.1} parent=1 // pred_check
      _
    $region15: #{_forward.1} parent=1 // pred_check_branch
      %42 = sbr.rel (0) target = $region17
    $region16: #{_forward.1} parent=1 // pred_region
      _
    $region17: #{_forward.1} parent=1 // pred_fallthru
      _
    // Predicated region
    $region18: #{_forward.1} parent=1 // pred_check
      _
    $region19: #{_forward.1} parent=1 // pred_check_branch
      %44 = sbr.rel (0) target = $region21
    $region20: #{_forward.1} parent=1 // pred_region
      _
    $region21: #{_forward.1} parent=1 // pred_fallthru
      _
    // Predicated region
    $region22: #{_forward.1} parent=1 // pred_check
      _
    $region23: #{_forward.1} parent=1 // pred_check_branch
      %46 = sbr.rel (0) target = $region25
    $region24: #{_forward.1} parent=1 // pred_region
      _
    $region25: #{_forward.1} parent=1 // pred_fallthru
      _
    // Predicated region
    $region26: #{_forward.1} parent=1 // pred_check
      _
    $region27: #{_forward.1} parent=1 // pred_check_branch
      %48 = sbr.rel (0) target = $region29
    $region28: #{_forward.1} parent=1 // pred_region
      %50 = dma.done [#allocation4], 32
    $region29: #{_forward.1} parent=1 // pred_fallthru
      _
    // Predicated region
    $region30: #{_forward.1} parent=1 // pred_check
      _
    $region31: #{_forward.1} parent=1 // pred_check_branch
      %52 = sbr.rel (0) target = $region33
    $region32: #{_forward.1} parent=1 // pred_region
      %54 = dma.done [#allocation6], 16
    $region33: #{_forward.1} parent=1 // pred_fallthru
      _
    // Predicated region
    $region34: #{_forward.1} parent=1 // pred_check
      _
    $region35: #{_forward.1} parent=1 // pred_check_branch
      %56 = sbr.rel (0) target = $region37
    $region36: #{_forward.1} parent=1 // pred_region
      %58 = dma.done [#allocation6], 16
    $region37: #{_forward.1} parent=1 // pred_fallthru
      _
    %59 = sfence
    %s60 = sld [smem:[#allocation2]]
    %s61 = smul.u32 0, 4
    %s62 = smul.addr %s61, 8
    %s63 = scalar_lea.vmem %s4, %s62
    %v64 = vld [vmem:[%s63] sm:$0xff]
    %v65 = vld [vmem:[%s63 + $0x8] sm:$0xff]
    %v66 = vld [vmem:[%s63 + $0x10] sm:$0xff]
    %v67 = vld [vmem:[%s63 + $0x18] sm:$0xff]
    %s68 = smul.addr %s61, 8
    %s69 = scalar_lea.vmem %s5, %s68
    %v70 = vld [vmem:[%s69] sm:$0xff]
    %v71 = vld [vmem:[%s69 + $0x8] sm:$0xff]
    %v72 = vld [vmem:[%s69 + $0x10] sm:$0xff]
    %v73 = vld [vmem:[%s69 + $0x18] sm:$0xff]
    %s74 = sld [smem:[#allocation3]]
    %v75 = vstv %s74
    %v76 = vmul.f32 %v75, %v64
    %v77 = vmul.f32 %v75, %v65
    %v78 = vmul.f32 %v75, %v66
    %v79 = vmul.f32 %v75, %v67
    %s80 = sld [smem:[#allocation3 + $0x80]]
    %v81 = vstv %s80
    %v82 = vmul.f32 %v81, %v70
    %v83 = vmul.f32 %v81, %v71
    %v84 = vmul.f32 %v81, %v72
    %v85 = vmul.f32 %v81, %v73
    %v86 = vadd.f32 %v76, %v82
    %v87 = vadd.f32 %v77, %v83
    %v88 = vadd.f32 %v78, %v84
    %v89 = vadd.f32 %v79, %v85
    %s90 = sld [smem:[#allocation5]]
    %v91 = vstv %s90
    %v92 = vadd.f32 %v86, %v91
    %v93 = vadd.f32 %v87, %v91
    %v94 = vadd.f32 %v88, %v91
    %v95 = vadd.f32 %v89, %v91
    %s96 = sld [smem:[#allocation7]]
    %v97 = vmax.f32 %v92, 0.0
    %v98 = vmax.f32 %v93, 0.0
    %v99 = vmax.f32 %v94, 0.0
    %v100 = vmax.f32 %v95, 0.0
    %v101 = vstv %s96
    %v102 = vmul.f32 %v101, %v97
    %v103 = vmul.f32 %v101, %v98
    %v104 = vmul.f32 %v101, %v99
    %v105 = vmul.f32 %v101, %v100
    %v106 = vadd.f32 %v102, 0.0
    %v107 = vadd.f32 %v103, 0.0
    %v108 = vadd.f32 %v104, 0.0
    %v109 = vadd.f32 %v105, 0.0
    %s110 = sld [smem:[#allocation3 + $0x1]]
    %v111 = vstv %s110
    %v112 = vmul.f32 %v111, %v64
    %v113 = vmul.f32 %v111, %v65
    %v114 = vmul.f32 %v111, %v66
    %v115 = vmul.f32 %v111, %v67
    %s116 = sld [smem:[#allocation3 + $0x81]]
    %v117 = vstv %s116
    %v118 = vmul.f32 %v117, %v70
    %v119 = vmul.f32 %v117, %v71
    %v120 = vmul.f32 %v117, %v72
    %v121 = vmul.f32 %v117, %v73
    %v122 = vadd.f32 %v112, %v118
    %v123 = vadd.f32 %v113, %v119
    %v124 = vadd.f32 %v114, %v120
    %v125 = vadd.f32 %v115, %v121
    %s126 = sld [smem:[#allocation5 + $0x1]]
    %v127 = vstv %s126
    %v128 = vadd.f32 %v122, %v127
    %v129 = vadd.f32 %v123, %v127
    %v130 = vadd.f32 %v124, %v127
    %v131 = vadd.f32 %v125, %v127
    %s132 = sld [smem:[#allocation7 + $0x1]]
    %v133 = vmax.f32 %v128, 0.0
    %v134 = vmax.f32 %v129, 0.0
    %v135 = vmax.f32 %v130, 0.0
    %v136 = vmax.f32 %v131, 0.0
    %v137 = vstv %s132
    %v138 = vmul.f32 %v137, %v133
    %v139 = vmul.f32 %v137, %v134
    %v140 = vmul.f32 %v137, %v135
    %v141 = vmul.f32 %v137, %v136
    %v142 = vadd.f32 %v106, %v138
    %v143 = vadd.f32 %v107, %v139
    %v144 = vadd.f32 %v108, %v140
    %v145 = vadd.f32 %v109, %v141
    %s146 = sld [smem:[#allocation3 + $0x2]]
    %v147 = vstv %s146
    %v148 = vmul.f32 %v147, %v64
    %v149 = vmul.f32 %v147, %v65
    %v150 = vmul.f32 %v147, %v66
    %v151 = vmul.f32 %v147, %v67
    %s152 = sld [smem:[#allocation3 + $0x82]]
    %v153 = vstv %s152
    %v154 = vmul.f32 %v153, %v70
    %v155 = vmul.f32 %v153, %v71
    %v156 = vmul.f32 %v153, %v72
    %v157 = vmul.f32 %v153, %v73
    %v158 = vadd.f32 %v148, %v154
    %v159 = vadd.f32 %v149, %v155
    %v160 = vadd.f32 %v150, %v156
    %v161 = vadd.f32 %v151, %v157
    %s162 = sld [smem:[#allocation5 + $0x2]]
    %v163 = vstv %s162
    %v164 = vadd.f32 %v158, %v163
    %v165 = vadd.f32 %v159, %v163
    %v166 = vadd.f32 %v160, %v163
    %v167 = vadd.f32 %v161, %v163
    %s168 = sld [smem:[#allocation7 + $0x2]]
    %v169 = vmax.f32 %v164, 0.0
    %v170 = vmax.f32 %v165, 0.0
    %v171 = vmax.f32 %v166, 0.0
    %v172 = vmax.f32 %v167, 0.0
    %v173 = vstv %s168
    %v174 = vmul.f32 %v173, %v169
    %v175 = vmul.f32 %v173, %v170
    %v176 = vmul.f32 %v173, %v171
    %v177 = vmul.f32 %v173, %v172
    %v178 = vadd.f32 %v142, %v174
    %v179 = vadd.f32 %v143, %v175
    %v180 = vadd.f32 %v144, %v176
    %v181 = vadd.f32 %v145, %v177
    %s182 = sld [smem:[#allocation3 + $0x3]]
    %v183 = vstv %s182
    %v184 = vmul.f32 %v183, %v64
    %v185 = vmul.f32 %v183, %v65
    %v186 = vmul.f32 %v183, %v66
    %v187 = vmul.f32 %v183, %v67
    %s188 = sld [smem:[#allocation3 + $0x83]]
    %v189 = vstv %s188
    %v190 = vmul.f32 %v189, %v70
    %v191 = vmul.f32 %v189, %v71
    %v192 = vmul.f32 %v189, %v72
    %v193 = vmul.f32 %v189, %v73
    %v194 = vadd.f32 %v184, %v190
    %v195 = vadd.f32 %v185, %v191
    %v196 = vadd.f32 %v186, %v192
    %v197 = vadd.f32 %v187, %v193
    %s198 = sld [smem:[#allocation5 + $0x3]]
    %v199 = vstv %s198
    %v200 = vadd.f32 %v194, %v199
    %v201 = vadd.f32 %v195, %v199
    %v202 = vadd.f32 %v196, %v199
    %v203 = vadd.f32 %v197, %v199
    %s204 = sld [smem:[#allocation7 + $0x3]]
    %v205 = vmax.f32 %v200, 0.0
    %v206 = vmax.f32 %v201, 0.0
    %v207 = vmax.f32 %v202, 0.0
    %v208 = vmax.f32 %v203, 0.0
    %v209 = vstv %s204
    %v210 = vmul.f32 %v209, %v205
    %v211 = vmul.f32 %v209, %v206
    %v212 = vmul.f32 %v209, %v207
    %v213 = vmul.f32 %v209, %v208
    %v214 = vadd.f32 %v178, %v210
    %v215 = vadd.f32 %v179, %v211
    %v216 = vadd.f32 %v180, %v212
    %v217 = vadd.f32 %v181, %v213
    %s218 = sld [smem:[#allocation3 + $0x4]]
    %v219 = vstv %s218
    %v220 = vmul.f32 %v219, %v64
    %v221 = vmul.f32 %v219, %v65
    %v222 = vmul.f32 %v219, %v66
    %v223 = vmul.f32 %v219, %v67
    %s224 = sld [smem:[#allocation3 + $0x84]]
    %v225 = vstv %s224
    %v226 = vmul.f32 %v225, %v70
    %v227 = vmul.f32 %v225, %v71
    %v228 = vmul.f32 %v225, %v72
    %v229 = vmul.f32 %v225, %v73
    %v230 = vadd.f32 %v220, %v226
    %v231 = vadd.f32 %v221, %v227
    %v232 = vadd.f32 %v222, %v228
    %v233 = vadd.f32 %v223, %v229
    %s234 = sld [smem:[#allocation5 + $0x4]]
    %v235 = vstv %s234
    %v236 = vadd.f32 %v230, %v235
    %v237 = vadd.f32 %v231, %v235
    %v238 = vadd.f32 %v232, %v235
    %v239 = vadd.f32 %v233, %v235
    %s240 = sld [smem:[#allocation7 + $0x4]]
    %v241 = vmax.f32 %v236, 0.0
    %v242 = vmax.f32 %v237, 0.0
    %v243 = vmax.f32 %v238, 0.0
    %v244 = vmax.f32 %v239, 0.0
    %v245 = vstv %s240
    %v246 = vmul.f32 %v245, %v241
    %v247 = vmul.f32 %v245, %v242
    %v248 = vmul.f32 %v245, %v243
    %v249 = vmul.f32 %v245, %v244
    %v250 = vadd.f32 %v214, %v246
    %v251 = vadd.f32 %v215, %v247
    %v252 = vadd.f32 %v216, %v248
    %v253 = vadd.f32 %v217, %v249
    %s254 = sld [smem:[#allocation3 + $0x5]]
    %v255 = vstv %s254
    %v256 = vmul.f32 %v255, %v64
    %v257 = vmul.f32 %v255, %v65
    %v258 = vmul.f32 %v255, %v66
    %v259 = vmul.f32 %v255, %v67
    %s260 = sld [smem:[#allocation3 + $0x85]]
    %v261 = vstv %s260
    %v262 = vmul.f32 %v261, %v70
    %v263 = vmul.f32 %v261, %v71
    %v264 = vmul.f32 %v261, %v72
    %v265 = vmul.f32 %v261, %v73
    %v266 = vadd.f32 %v256, %v262
    %v267 = vadd.f32 %v257, %v263
    %v268 = vadd.f32 %v258, %v264
    %v269 = vadd.f32 %v259, %v265
    %s270 = sld [smem:[#allocation5 + $0x5]]
    %v271 = vstv %s270
    %v272 = vadd.f32 %v266, %v271
    %v273 = vadd.f32 %v267, %v271
    %v274 = vadd.f32 %v268, %v271
    %v275 = vadd.f32 %v269, %v271
    %s276 = sld [smem:[#allocation7 + $0x5]]
    %v277 = vmax.f32 %v272, 0.0
    %v278 = vmax.f32 %v273, 0.0
    %v279 = vmax.f32 %v274, 0.0
    %v280 = vmax.f32 %v275, 0.0
    %v281 = vstv %s276
    %v282 = vmul.f32 %v281, %v277
    %v283 = vmul.f32 %v281, %v278
    %v284 = vmul.f32 %v281, %v279
    %v285 = vmul.f32 %v281, %v280
    %v286 = vadd.f32 %v250, %v282
    %v287 = vadd.f32 %v251, %v283
    %v288 = vadd.f32 %v252, %v284
    %v289 = vadd.f32 %v253, %v285
    %s290 = sld [smem:[#allocation3 + $0x6]]
    %v291 = vstv %s290
    %v292 = vmul.f32 %v291, %v64
    %v293 = vmul.f32 %v291, %v65
    %v294 = vmul.f32 %v291, %v66
    %v295 = vmul.f32 %v291, %v67
    %s296 = sld [smem:[#allocation3 + $0x86]]
    %v297 = vstv %s296
    %v298 = vmul.f32 %v297, %v70
    %v299 = vmul.f32 %v297, %v71
    %v300 = vmul.f32 %v297, %v72
    %v301 = vmul.f32 %v297, %v73
    %v302 = vadd.f32 %v292, %v298
    %v303 = vadd.f32 %v293, %v299
    %v304 = vadd.f32 %v294, %v300
    %v305 = vadd.f32 %v295, %v301
    %s306 = sld [smem:[#allocation5 + $0x6]]
    %v307 = vstv %s306
    %v308 = vadd.f32 %v302, %v307
    %v309 = vadd.f32 %v303, %v307
    %v310 = vadd.f32 %v304, %v307
    %v311 = vadd.f32 %v305, %v307
    %s312 = sld [smem:[#allocation7 + $0x6]]
    %v313 = vmax.f32 %v308, 0.0
    %v314 = vmax.f32 %v309, 0.0
    %v315 = vmax.f32 %v310, 0.0
    %v316 = vmax.f32 %v311, 0.0
    %v317 = vstv %s312
    %v318 = vmul.f32 %v317, %v313
    %v319 = vmul.f32 %v317, %v314
    %v320 = vmul.f32 %v317, %v315
    %v321 = vmul.f32 %v317, %v316
    %v322 = vadd.f32 %v286, %v318
    %v323 = vadd.f32 %v287, %v319
    %v324 = vadd.f32 %v288, %v320
    %v325 = vadd.f32 %v289, %v321
    %s326 = sld [smem:[#allocation3 + $0x7]]
    %v327 = vstv %s326
    %v328 = vmul.f32 %v327, %v64
    %v329 = vmul.f32 %v327, %v65
    %v330 = vmul.f32 %v327, %v66
    %v331 = vmul.f32 %v327, %v67
    %s332 = sld [smem:[#allocation3 + $0x87]]
    %v333 = vstv %s332
    %v334 = vmul.f32 %v333, %v70
    %v335 = vmul.f32 %v333, %v71
    %v336 = vmul.f32 %v333, %v72
    %v337 = vmul.f32 %v333, %v73
    %v338 = vadd.f32 %v328, %v334
    %v339 = vadd.f32 %v329, %v335
    %v340 = vadd.f32 %v330, %v336
    %v341 = vadd.f32 %v331, %v337
    %s342 = sld [smem:[#allocation5 + $0x7]]
    %v343 = vstv %s342
    %v344 = vadd.f32 %v338, %v343
    %v345 = vadd.f32 %v339, %v343
    %v346 = vadd.f32 %v340, %v343
    %v347 = vadd.f32 %v341, %v343
    %s348 = sld [smem:[#allocation7 + $0x7]]
    %v349 = vmax.f32 %v344, 0.0
    %v350 = vmax.f32 %v345, 0.0
    %v351 = vmax.f32 %v346, 0.0
    %v352 = vmax.f32 %v347, 0.0
    %v353 = vstv %s348
    %v354 = vmul.f32 %v353, %v349
    %v355 = vmul.f32 %v353, %v350
    %v356 = vmul.f32 %v353, %v351
    %v357 = vmul.f32 %v353, %v352
    %v358 = vadd.f32 %v322, %v354
    %v359 = vadd.f32 %v323, %v355
    %v360 = vadd.f32 %v324, %v356
    %v361 = vadd.f32 %v325, %v357
    %s362 = sld [smem:[#allocation3 + $0x8]]
    %v363 = vstv %s362
    %v364 = vmul.f32 %v363, %v64
    %v365 = vmul.f32 %v363, %v65
    %v366 = vmul.f32 %v363, %v66
    %v367 = vmul.f32 %v363, %v67
    %s368 = sld [smem:[#allocation3 + $0x88]]
    %v369 = vstv %s368
    %v370 = vmul.f32 %v369, %v70
    %v371 = vmul.f32 %v369, %v71
    %v372 = vmul.f32 %v369, %v72
    %v373 = vmul.f32 %v369, %v73
    %v374 = vadd.f32 %v364, %v370
    %v375 = vadd.f32 %v365, %v371
    %v376 = vadd.f32 %v366, %v372
    %v377 = vadd.f32 %v367, %v373
    %s378 = sld [smem:[#allocation5 + $0x8]]
    %v379 = vstv %s378
    %v380 = vadd.f32 %v374, %v379
    %v381 = vadd.f32 %v375, %v379
    %v382 = vadd.f32 %v376, %v379
    %v383 = vadd.f32 %v377, %v379
    %s384 = sld [smem:[#allocation7 + $0x8]]
    %v385 = vmax.f32 %v380, 0.0
    %v386 = vmax.f32 %v381, 0.0
    %v387 = vmax.f32 %v382, 0.0
    %v388 = vmax.f32 %v383, 0.0
    %v389 = vstv %s384
    %v390 = vmul.f32 %v389, %v385
    %v391 = vmul.f32 %v389, %v386
    %v392 = vmul.f32 %v389, %v387
    %v393 = vmul.f32 %v389, %v388
    %v394 = vadd.f32 %v358, %v390
    %v395 = vadd.f32 %v359, %v391
    %v396 = vadd.f32 %v360, %v392
    %v397 = vadd.f32 %v361, %v393
    %s398 = sld [smem:[#allocation3 + $0x9]]
    %v399 = vstv %s398
    %v400 = vmul.f32 %v399, %v64
    %v401 = vmul.f32 %v399, %v65
    %v402 = vmul.f32 %v399, %v66
    %v403 = vmul.f32 %v399, %v67
    %s404 = sld [smem:[#allocation3 + $0x89]]
    %v405 = vstv %s404
    %v406 = vmul.f32 %v405, %v70
    %v407 = vmul.f32 %v405, %v71
    %v408 = vmul.f32 %v405, %v72
    %v409 = vmul.f32 %v405, %v73
    %v410 = vadd.f32 %v400, %v406
    %v411 = vadd.f32 %v401, %v407
    %v412 = vadd.f32 %v402, %v408
    %v413 = vadd.f32 %v403, %v409
    %s414 = sld [smem:[#allocation5 + $0x9]]
    %v415 = vstv %s414
    %v416 = vadd.f32 %v410, %v415
    %v417 = vadd.f32 %v411, %v415
    %v418 = vadd.f32 %v412, %v415
    %v419 = vadd.f32 %v413, %v415
    %s420 = sld [smem:[#allocation7 + $0x9]]
    %v421 = vmax.f32 %v416, 0.0
    %v422 = vmax.f32 %v417, 0.0
    %v423 = vmax.f32 %v418, 0.0
    %v424 = vmax.f32 %v419, 0.0
    %v425 = vstv %s420
    %v426 = vmul.f32 %v425, %v421
    %v427 = vmul.f32 %v425, %v422
    %v428 = vmul.f32 %v425, %v423
    %v429 = vmul.f32 %v425, %v424
    %v430 = vadd.f32 %v394, %v426
    %v431 = vadd.f32 %v395, %v427
    %v432 = vadd.f32 %v396, %v428
    %v433 = vadd.f32 %v397, %v429
    %s434 = sld [smem:[#allocation3 + $0xa]]
    %v435 = vstv %s434
    %v436 = vmul.f32 %v435, %v64
    %v437 = vmul.f32 %v435, %v65
    %v438 = vmul.f32 %v435, %v66
    %v439 = vmul.f32 %v435, %v67
    %s440 = sld [smem:[#allocation3 + $0x8a]]
    %v441 = vstv %s440
    %v442 = vmul.f32 %v441, %v70
    %v443 = vmul.f32 %v441, %v71
    %v444 = vmul.f32 %v441, %v72
    %v445 = vmul.f32 %v441, %v73
    %v446 = vadd.f32 %v436, %v442
    %v447 = vadd.f32 %v437, %v443
    %v448 = vadd.f32 %v438, %v444
    %v449 = vadd.f32 %v439, %v445
    %s450 = sld [smem:[#allocation5 + $0xa]]
    %v451 = vstv %s450
    %v452 = vadd.f32 %v446, %v451
    %v453 = vadd.f32 %v447, %v451
    %v454 = vadd.f32 %v448, %v451
    %v455 = vadd.f32 %v449, %v451
    %s456 = sld [smem:[#allocation7 + $0xa]]
    %v457 = vmax.f32 %v452, 0.0
    %v458 = vmax.f32 %v453, 0.0
    %v459 = vmax.f32 %v454, 0.0
    %v460 = vmax.f32 %v455, 0.0
    %v461 = vstv %s456
    %v462 = vmul.f32 %v461, %v457
    %v463 = vmul.f32 %v461, %v458
    %v464 = vmul.f32 %v461, %v459
    %v465 = vmul.f32 %v461, %v460
    %v466 = vadd.f32 %v430, %v462
    %v467 = vadd.f32 %v431, %v463
    %v468 = vadd.f32 %v432, %v464
    %v469 = vadd.f32 %v433, %v465
    %s470 = sld [smem:[#allocation3 + $0xb]]
    %v471 = vstv %s470
    %v472 = vmul.f32 %v471, %v64
    %v473 = vmul.f32 %v471, %v65
    %v474 = vmul.f32 %v471, %v66
    %v475 = vmul.f32 %v471, %v67
    %s476 = sld [smem:[#allocation3 + $0x8b]]
    %v477 = vstv %s476
    %v478 = vmul.f32 %v477, %v70
    %v479 = vmul.f32 %v477, %v71
    %v480 = vmul.f32 %v477, %v72
    %v481 = vmul.f32 %v477, %v73
    %v482 = vadd.f32 %v472, %v478
    %v483 = vadd.f32 %v473, %v479
    %v484 = vadd.f32 %v474, %v480
    %v485 = vadd.f32 %v475, %v481
    %s486 = sld [smem:[#allocation5 + $0xb]]
    %v487 = vstv %s486
    %v488 = vadd.f32 %v482, %v487
    %v489 = vadd.f32 %v483, %v487
    %v490 = vadd.f32 %v484, %v487
    %v491 = vadd.f32 %v485, %v487
    %s492 = sld [smem:[#allocation7 + $0xb]]
    %v493 = vmax.f32 %v488, 0.0
    %v494 = vmax.f32 %v489, 0.0
    %v495 = vmax.f32 %v490, 0.0
    %v496 = vmax.f32 %v491, 0.0
    %v497 = vstv %s492
    %v498 = vmul.f32 %v497, %v493
    %v499 = vmul.f32 %v497, %v494
    %v500 = vmul.f32 %v497, %v495
    %v501 = vmul.f32 %v497, %v496
    %v502 = vadd.f32 %v466, %v498
    %v503 = vadd.f32 %v467, %v499
    %v504 = vadd.f32 %v468, %v500
    %v505 = vadd.f32 %v469, %v501
    %s506 = sld [smem:[#allocation3 + $0xc]]
    %v507 = vstv %s506
    %v508 = vmul.f32 %v507, %v64
    %v509 = vmul.f32 %v507, %v65
    %v510 = vmul.f32 %v507, %v66
    %v511 = vmul.f32 %v507, %v67
    %s512 = sld [smem:[#allocation3 + $0x8c]]
    %v513 = vstv %s512
    %v514 = vmul.f32 %v513, %v70
    %v515 = vmul.f32 %v513, %v71
    %v516 = vmul.f32 %v513, %v72
    %v517 = vmul.f32 %v513, %v73
    %v518 = vadd.f32 %v508, %v514
    %v519 = vadd.f32 %v509, %v515
    %v520 = vadd.f32 %v510, %v516
    %v521 = vadd.f32 %v511, %v517
    %s522 = sld [smem:[#allocation5 + $0xc]]
    %v523 = vstv %s522
    %v524 = vadd.f32 %v518, %v523
    %v525 = vadd.f32 %v519, %v523
    %v526 = vadd.f32 %v520, %v523
    %v527 = vadd.f32 %v521, %v523
    %s528 = sld [smem:[#allocation7 + $0xc]]
    %v529 = vmax.f32 %v524, 0.0
    %v530 = vmax.f32 %v525, 0.0
    %v531 = vmax.f32 %v526, 0.0
    %v532 = vmax.f32 %v527, 0.0
    %v533 = vstv %s528
    %v534 = vmul.f32 %v533, %v529
    %v535 = vmul.f32 %v533, %v530
    %v536 = vmul.f32 %v533, %v531
    %v537 = vmul.f32 %v533, %v532
    %v538 = vadd.f32 %v502, %v534
    %v539 = vadd.f32 %v503, %v535
    %v540 = vadd.f32 %v504, %v536
    %v541 = vadd.f32 %v505, %v537
    %s542 = sld [smem:[#allocation3 + $0xd]]
    %v543 = vstv %s542
    %v544 = vmul.f32 %v543, %v64
    %v545 = vmul.f32 %v543, %v65
    %v546 = vmul.f32 %v543, %v66
    %v547 = vmul.f32 %v543, %v67
    %s548 = sld [smem:[#allocation3 + $0x8d]]
    %v549 = vstv %s548
    %v550 = vmul.f32 %v549, %v70
    %v551 = vmul.f32 %v549, %v71
    %v552 = vmul.f32 %v549, %v72
    %v553 = vmul.f32 %v549, %v73
    %v554 = vadd.f32 %v544, %v550
    %v555 = vadd.f32 %v545, %v551
    %v556 = vadd.f32 %v546, %v552
    %v557 = vadd.f32 %v547, %v553
    %s558 = sld [smem:[#allocation5 + $0xd]]
    %v559 = vstv %s558
    %v560 = vadd.f32 %v554, %v559
    %v561 = vadd.f32 %v555, %v559
    %v562 = vadd.f32 %v556, %v559
    %v563 = vadd.f32 %v557, %v559
    %s564 = sld [smem:[#allocation7 + $0xd]]
    %v565 = vmax.f32 %v560, 0.0
    %v566 = vmax.f32 %v561, 0.0
    %v567 = vmax.f32 %v562, 0.0
    %v568 = vmax.f32 %v563, 0.0
    %v569 = vstv %s564
    %v570 = vmul.f32 %v569, %v565
    %v571 = vmul.f32 %v569, %v566
    %v572 = vmul.f32 %v569, %v567
    %v573 = vmul.f32 %v569, %v568
    %v574 = vadd.f32 %v538, %v570
    %v575 = vadd.f32 %v539, %v571
    %v576 = vadd.f32 %v540, %v572
    %v577 = vadd.f32 %v541, %v573
    %s578 = sld [smem:[#allocation3 + $0xe]]
    %v579 = vstv %s578
    %v580 = vmul.f32 %v579, %v64
    %v581 = vmul.f32 %v579, %v65
    %v582 = vmul.f32 %v579, %v66
    %v583 = vmul.f32 %v579, %v67
    %s584 = sld [smem:[#allocation3 + $0x8e]]
    %v585 = vstv %s584
    %v586 = vmul.f32 %v585, %v70
    %v587 = vmul.f32 %v585, %v71
    %v588 = vmul.f32 %v585, %v72
    %v589 = vmul.f32 %v585, %v73
    %v590 = vadd.f32 %v580, %v586
    %v591 = vadd.f32 %v581, %v587
    %v592 = vadd.f32 %v582, %v588
    %v593 = vadd.f32 %v583, %v589
    %s594 = sld [smem:[#allocation5 + $0xe]]
    %v595 = vstv %s594
    %v596 = vadd.f32 %v590, %v595
    %v597 = vadd.f32 %v591, %v595
    %v598 = vadd.f32 %v592, %v595
    %v599 = vadd.f32 %v593, %v595
    %s600 = sld [smem:[#allocation7 + $0xe]]
    %v601 = vmax.f32 %v596, 0.0
    %v602 = vmax.f32 %v597, 0.0
    %v603 = vmax.f32 %v598, 0.0
    %v604 = vmax.f32 %v599, 0.0
    %v605 = vstv %s600
    %v606 = vmul.f32 %v605, %v601
    %v607 = vmul.f32 %v605, %v602
    %v608 = vmul.f32 %v605, %v603
    %v609 = vmul.f32 %v605, %v604
    %v610 = vadd.f32 %v574, %v606
    %v611 = vadd.f32 %v575, %v607
    %v612 = vadd.f32 %v576, %v608
    %v613 = vadd.f32 %v577, %v609
    %s614 = sld [smem:[#allocation3 + $0xf]]
    %v615 = vstv %s614
    %v616 = vmul.f32 %v615, %v64
    %v617 = vmul.f32 %v615, %v65
    %v618 = vmul.f32 %v615, %v66
    %v619 = vmul.f32 %v615, %v67
    %s620 = sld [smem:[#allocation3 + $0x8f]]
    %v621 = vstv %s620
    %v622 = vmul.f32 %v621, %v70
    %v623 = vmul.f32 %v621, %v71
    %v624 = vmul.f32 %v621, %v72
    %v625 = vmul.f32 %v621, %v73
    %v626 = vadd.f32 %v616, %v622
    %v627 = vadd.f32 %v617, %v623
    %v628 = vadd.f32 %v618, %v624
    %v629 = vadd.f32 %v619, %v625
    %s630 = sld [smem:[#allocation5 + $0xf]]
    %v631 = vstv %s630
    %v632 = vadd.f32 %v626, %v631
    %v633 = vadd.f32 %v627, %v631
    %v634 = vadd.f32 %v628, %v631
    %v635 = vadd.f32 %v629, %v631
    %s636 = sld [smem:[#allocation7 + $0xf]]
    %v637 = vmax.f32 %v632, 0.0
    %v638 = vmax.f32 %v633, 0.0
    %v639 = vmax.f32 %v634, 0.0
    %v640 = vmax.f32 %v635, 0.0
    %v641 = vstv %s636
    %v642 = vmul.f32 %v641, %v637
    %v643 = vmul.f32 %v641, %v638
    %v644 = vmul.f32 %v641, %v639
    %v645 = vmul.f32 %v641, %v640
    %v646 = vadd.f32 %v610, %v642
    %v647 = vadd.f32 %v611, %v643
    %v648 = vadd.f32 %v612, %v644
    %v649 = vadd.f32 %v613, %v645
    %s650 = sld [smem:[#allocation3 + $0x10]]
    %v651 = vstv %s650
    %v652 = vmul.f32 %v651, %v64
    %v653 = vmul.f32 %v651, %v65
    %v654 = vmul.f32 %v651, %v66
    %v655 = vmul.f32 %v651, %v67
    %s656 = sld [smem:[#allocation3 + $0x90]]
    %v657 = vstv %s656
    %v658 = vmul.f32 %v657, %v70
    %v659 = vmul.f32 %v657, %v71
    %v660 = vmul.f32 %v657, %v72
    %v661 = vmul.f32 %v657, %v73
    %v662 = vadd.f32 %v652, %v658
    %v663 = vadd.f32 %v653, %v659
    %v664 = vadd.f32 %v654, %v660
    %v665 = vadd.f32 %v655, %v661
    %s666 = sld [smem:[#allocation5 + $0x10]]
    %v667 = vstv %s666
    %v668 = vadd.f32 %v662, %v667
    %v669 = vadd.f32 %v663, %v667
    %v670 = vadd.f32 %v664, %v667
    %v671 = vadd.f32 %v665, %v667
    %s672 = sld [smem:[#allocation7 + $0x10]]
    %v673 = vmax.f32 %v668, 0.0
    %v674 = vmax.f32 %v669, 0.0
    %v675 = vmax.f32 %v670, 0.0
    %v676 = vmax.f32 %v671, 0.0
    %v677 = vstv %s672
    %v678 = vmul.f32 %v677, %v673
    %v679 = vmul.f32 %v677, %v674
    %v680 = vmul.f32 %v677, %v675
    %v681 = vmul.f32 %v677, %v676
    %v682 = vadd.f32 %v646, %v678
    %v683 = vadd.f32 %v647, %v679
    %v684 = vadd.f32 %v648, %v680
    %v685 = vadd.f32 %v649, %v681
    %s686 = sld [smem:[#allocation3 + $0x11]]
    %v687 = vstv %s686
    %v688 = vmul.f32 %v687, %v64
    %v689 = vmul.f32 %v687, %v65
    %v690 = vmul.f32 %v687, %v66
    %v691 = vmul.f32 %v687, %v67
    %s692 = sld [smem:[#allocation3 + $0x91]]
    %v693 = vstv %s692
    %v694 = vmul.f32 %v693, %v70
    %v695 = vmul.f32 %v693, %v71
    %v696 = vmul.f32 %v693, %v72
    %v697 = vmul.f32 %v693, %v73
    %v698 = vadd.f32 %v688, %v694
    %v699 = vadd.f32 %v689, %v695
    %v700 = vadd.f32 %v690, %v696
    %v701 = vadd.f32 %v691, %v697
    %s702 = sld [smem:[#allocation5 + $0x11]]
    %v703 = vstv %s702
    %v704 = vadd.f32 %v698, %v703
    %v705 = vadd.f32 %v699, %v703
    %v706 = vadd.f32 %v700, %v703
    %v707 = vadd.f32 %v701, %v703
    %s708 = sld [smem:[#allocation7 + $0x11]]
    %v709 = vmax.f32 %v704, 0.0
    %v710 = vmax.f32 %v705, 0.0
    %v711 = vmax.f32 %v706, 0.0
    %v712 = vmax.f32 %v707, 0.0
    %v713 = vstv %s708
    %v714 = vmul.f32 %v713, %v709
    %v715 = vmul.f32 %v713, %v710
    %v716 = vmul.f32 %v713, %v711
    %v717 = vmul.f32 %v713, %v712
    %v718 = vadd.f32 %v682, %v714
    %v719 = vadd.f32 %v683, %v715
    %v720 = vadd.f32 %v684, %v716
    %v721 = vadd.f32 %v685, %v717
    %s722 = sld [smem:[#allocation3 + $0x12]]
    %v723 = vstv %s722
    %v724 = vmul.f32 %v723, %v64
    %v725 = vmul.f32 %v723, %v65
    %v726 = vmul.f32 %v723, %v66
    %v727 = vmul.f32 %v723, %v67
    %s728 = sld [smem:[#allocation3 + $0x92]]
    %v729 = vstv %s728
    %v730 = vmul.f32 %v729, %v70
    %v731 = vmul.f32 %v729, %v71
    %v732 = vmul.f32 %v729, %v72
    %v733 = vmul.f32 %v729, %v73
    %v734 = vadd.f32 %v724, %v730
    %v735 = vadd.f32 %v725, %v731
    %v736 = vadd.f32 %v726, %v732
    %v737 = vadd.f32 %v727, %v733
    %s738 = sld [smem:[#allocation5 + $0x12]]
    %v739 = vstv %s738
    %v740 = vadd.f32 %v734, %v739
    %v741 = vadd.f32 %v735, %v739
    %v742 = vadd.f32 %v736, %v739
    %v743 = vadd.f32 %v737, %v739
    %s744 = sld [smem:[#allocation7 + $0x12]]
    %v745 = vmax.f32 %v740, 0.0
    %v746 = vmax.f32 %v741, 0.0
    %v747 = vmax.f32 %v742, 0.0
    %v748 = vmax.f32 %v743, 0.0
    %v749 = vstv %s744
    %v750 = vmul.f32 %v749, %v745
    %v751 = vmul.f32 %v749, %v746
    %v752 = vmul.f32 %v749, %v747
    %v753 = vmul.f32 %v749, %v748
    %v754 = vadd.f32 %v718, %v750
    %v755 = vadd.f32 %v719, %v751
    %v756 = vadd.f32 %v720, %v752
    %v757 = vadd.f32 %v721, %v753
    %s758 = sld [smem:[#allocation3 + $0x13]]
    %v759 = vstv %s758
    %v760 = vmul.f32 %v759, %v64
    %v761 = vmul.f32 %v759, %v65
    %v762 = vmul.f32 %v759, %v66
    %v763 = vmul.f32 %v759, %v67
    %s764 = sld [smem:[#allocation3 + $0x93]]
    %v765 = vstv %s764
    %v766 = vmul.f32 %v765, %v70
    %v767 = vmul.f32 %v765, %v71
    %v768 = vmul.f32 %v765, %v72
    %v769 = vmul.f32 %v765, %v73
    %v770 = vadd.f32 %v760, %v766
    %v771 = vadd.f32 %v761, %v767
    %v772 = vadd.f32 %v762, %v768
    %v773 = vadd.f32 %v763, %v769
    %s774 = sld [smem:[#allocation5 + $0x13]]
    %v775 = vstv %s774
    %v776 = vadd.f32 %v770, %v775
    %v777 = vadd.f32 %v771, %v775
    %v778 = vadd.f32 %v772, %v775
    %v779 = vadd.f32 %v773, %v775
    %s780 = sld [smem:[#allocation7 + $0x13]]
    %v781 = vmax.f32 %v776, 0.0
    %v782 = vmax.f32 %v777, 0.0
    %v783 = vmax.f32 %v778, 0.0
    %v784 = vmax.f32 %v779, 0.0
    %v785 = vstv %s780
    %v786 = vmul.f32 %v785, %v781
    %v787 = vmul.f32 %v785, %v782
    %v788 = vmul.f32 %v785, %v783
    %v789 = vmul.f32 %v785, %v784
    %v790 = vadd.f32 %v754, %v786
    %v791 = vadd.f32 %v755, %v787
    %v792 = vadd.f32 %v756, %v788
    %v793 = vadd.f32 %v757, %v789
    %v794 = vstv %s60
    %v795 = vadd.f32 %v790, %v794
    %v796 = vadd.f32 %v791, %v794
    %v797 = vadd.f32 %v792, %v794
    %v798 = vadd.f32 %v793, %v794
    %s799 = smul.addr %s61, 8
    %s800 = scalar_lea.vmem %s6, %s799
    %801 = vst [vmem:[%s800] sm:$0xff] %v795
    %802 = vst [vmem:[%s800 + $0x8] sm:$0xff] %v796
    %803 = vst [vmem:[%s800 + $0x10] sm:$0xff] %v797
    %804 = vst [vmem:[%s800 + $0x18] sm:$0xff] %v798
    // Predicated region
    $region38: #{_forward.1} parent=1 // pred_check
      _
    $region39: #{_forward.1} parent=1 // pred_check_branch
      %806 = sbr.rel (0) target = $region41
    $region40: #{_forward.1} parent=1 // pred_region
      _
    $region41: #{_forward.1} parent=1 // pred_fallthru
      _
    // Predicated region
    $region42: #{_forward.1} parent=1 // pred_check
      _
    $region43: #{_forward.1} parent=1 // pred_check_branch
      %808 = sbr.rel (0) target = $region45
    $region44: #{_forward.1} parent=1 // pred_region
      _
    $region45: #{_forward.1} parent=1 // pred_fallthru
      _
    %809 = vsyncpa [#allocation4], 1
    %810 = vsyncpa [#allocation6], 1

</llo_original>
